<compile_context>
chip_gen: v6e
topology: v6e:2x2x1
jax: 0.10.0
libtpu: 0.0.40
codegen_flags: <defaults>
</compile_context>

<pallas_src>
import functools

import jax
import jax.numpy as jnp
from jax.experimental import pallas as pl
from jax.experimental.pallas import tpu as pltpu


def _round_up(x, m):
    return (x + m - 1) // m * m


def _gcn_kernel(a_ref, x_ref, w_ref, b_ref, d_ref, o_ref, acc_ref):
    # a_ref:   (TM, TK)   A_hat block, bf16 (exact 0/1)
    # x_ref:   (TK, Fp)   dinv-scaled node features, bf16
    # w_ref:   (Fp, Cp)   pre-transposed, lane-padded weight, f32
    # b_ref:   (1,  Cp)   lane-padded bias, f32
    # d_ref:   (TM, 1)    dinv for the output rows, f32
    # o_ref:   (TM, Cp)   output block, f32
    # acc_ref: (TM, Fp)   f32 aggregation accumulator (scratch, resident over K)
    k = pl.program_id(1)

    @pl.when(k == 0)
    def _():
        acc_ref[...] = jnp.zeros_like(acc_ref)

    # Aggregate neighbors for this K slab: bf16 x bf16 MXU matmul, f32 accumulate.
    acc_ref[...] += jnp.dot(
        a_ref[...], x_ref[...], preferred_element_type=jnp.float32
    )

    @pl.when(k == pl.num_programs(1) - 1)
    def _():
        # Epilogue: f32 row scaling (dinv_i), then the dense linear transform.
        agg = d_ref[...] * acc_ref[...]
        o_ref[...] = (
            jnp.dot(agg, w_ref[...], preferred_element_type=jnp.float32)
            + b_ref[...]
        )


def _gcn_graph(edge_index, num_nodes):
    """Dense A_hat = A + I (unweighted) and dinv = deg^{-1/2} (PyG gcn_norm).

    Note: duplicate edges collapse to weight 1 here (PyG scatter-adds on
    multigraphs); identical for simple graphs like the tests below.
    """
    src, dst = edge_index[0], edge_index[1]
    a_hat = jnp.zeros((num_nodes, num_nodes), jnp.float32).at[dst, src].set(1.0)
    a_hat = jnp.maximum(a_hat, jnp.eye(num_nodes, dtype=jnp.float32))
    deg = a_hat.sum(axis=1)
    dinv = jnp.where(deg > 0.0, jax.lax.rsqrt(deg), 0.0)
    return a_hat, dinv


@functools.partial(jax.jit, static_argnames=("tile_m", "tile_k"))
def encoder_forward(x, edge_index, weight, bias, *, tile_m=256, tile_k=512):
    """Encoder forward (GCN base model): out = A_norm @ x @ weight.T + bias.

    x:          [N, F_in]  float32 node features
    edge_index: [2, E]     int32 COO edges (row0 = src, row1 = dst)
    weight:     [C, F_in]  float32 (PyTorch Linear layout)
    bias:       [C]        float32
    """
    N, F_in = x.shape
    C = weight.shape[0]

    # ---- glue: densify graph + degrees (data-dependent scatter). ----
    a_hat, dinv = _gcn_graph(edge_index, N)

    # ---- tiling: rows (M) and contraction (K) tiled independently. ----
    tm = min(_round_up(tile_m, 8), _round_up(N, 8))
    tk = min(_round_up(tile_k, 8), _round_up(N, 8))
    n_pad_m = _round_up(N, tm)
    n_pad_k = _round_up(N, tk)
    f_pad = _round_up(F_in, 128)
    c_pad = _round_up(C, 128)

    # A_hat streamed in bf16 (entries are exact 0/1 -> no precision loss).
    a_p = (
        jnp.zeros((n_pad_m, n_pad_k), jnp.bfloat16)
        .at[:N, :N]
        .set(a_hat.astype(jnp.bfloat16))
    )
    # Column (source-node) dinv scaling applied in f32 BEFORE the bf16 cast.
    xs = dinv[:, None] * x.astype(jnp.float32)
    x_p = (
        jnp.zeros((n_pad_k, f_pad), jnp.bfloat16)
        .at[:N, :F_in]
        .set(xs.astype(jnp.bfloat16))
    )
    # Pre-transposed weight [F_in, C] -> both dots contract the last axis.
    w_p = (
        jnp.zeros((f_pad, c_pad), jnp.float32)
        .at[:F_in, :C]
        .set(weight.astype(jnp.float32).T)
    )
    b_p = jnp.zeros((1, c_pad), jnp.float32).at[0, :C].set(bias.astype(jnp.float32))
    d_p = jnp.zeros((n_pad_m, 1), jnp.float32).at[:N, 0].set(dinv)

    grid = (n_pad_m // tm, n_pad_k // tk)

    # VMEM budget (double-buffered):  2*tm*tk*2 + 2*tk*f_pad*2 + 2*tm*c_pad*4
    #                               + tm*f_pad*4 + small (W, b, dinv)
    # ~1.5 MiB at tm=256, tk=512, f_pad=c_pad=128 -> fits all of v5e/v6e/v7x
    # without raising vmem_limit_bytes, independent of N.
    out = pl.pallas_call(
        _gcn_kernel,
        out_shape=jax.ShapeDtypeStruct((n_pad_m, c_pad), jnp.float32),
        grid=grid,
        in_specs=[
            pl.BlockSpec((tm, tk), lambda i, k: (i, k)),       # A_hat block
            pl.BlockSpec((tk, f_pad), lambda i, k: (k, 0)),    # scaled features
            pl.BlockSpec((f_pad, c_pad), lambda i, k: (0, 0)),  # weight (resident)
            pl.BlockSpec((1, c_pad), lambda i, k: (0, 0)),      # bias (resident)
            pl.BlockSpec((tm, 1), lambda i, k: (i, 0)),         # dinv row block
        ],
        out_specs=pl.BlockSpec((tm, c_pad), lambda i, k: (i, 0)),
        scratch_shapes=[pltpu.VMEM((tm, f_pad), jnp.float32)],
        compiler_params=pltpu.CompilerParams(
            dimension_semantics=("parallel", "arbitrary"),
        ),
    )(a_p, x_p, w_p, b_p, d_p)

    return out[:N, :C]


def _reference(x, edge_index, weight, bias):
    a_hat, dinv = _gcn_graph(edge_index, x.shape[0])
    a_norm = dinv[:, None] * a_hat * dinv[None, :]
    return a_norm @ x @ weight.T + bias


if __name__ == "__main__":
    key = jax.random.PRNGKey(0)

    def make_case(key, n, f_in, f_out):
        k_x, k_w = jax.random.split(key, 2)
        x = jax.random.normal(k_x, (n, f_in), jnp.float32)
        bound = (6.0 / (f_in + f_out)) ** 0.5
        weight = jax.random.uniform(k_w, (f_out, f_in), jnp.float32, -bound, bound)
        bias = jnp.zeros((f_out,), jnp.float32)
        # Deterministic ring graph, edges in both directions (no duplicates).
        src = jnp.arange(n, dtype=jnp.int32)
        dst = (src + 1) % n
        edge_index = jnp.stack(
            [jnp.concatenate([src, dst]), jnp.concatenate([dst, src])], axis=0
        )
        return x, edge_index, weight, bias

    # Case 1: tiny shapes consistent with the module (8 nodes, 32 -> 16 channels).
    k1, k2 = jax.random.split(key)
    x, ei, w, b = make_case(k1, 8, 32, 16)
    out = encoder_forward(x, ei, w, b)
    jax.block_until_ready(out)
    ref = _reference(x, ei, w, b)
    assert out.shape == (8, 16)
    assert jnp.allclose(out, ref, atol=2e-2, rtol=2e-2), (
        float(jnp.max(jnp.abs(out - ref)))
    )

    # Case 2: small multi-tile case exercising the (rows x K) grid + accumulator.
    x2, ei2, w2, b2 = make_case(k2, 300, 32, 16)
    out2 = encoder_forward(x2, ei2, w2, b2, tile_m=128, tile_k=128)
    jax.block_until_ready(out2)
    ref2 = _reference(x2, ei2, w2, b2)
    assert out2.shape == (300, 16)
    assert jnp.allclose(out2, ref2, atol=2e-2, rtol=2e-2), (
        float(jnp.max(jnp.abs(out2 - ref2)))
    )

    print("KERNEL_OK")
</pallas_src>

<mosaic_0001>
module attributes {stable_mosaic.version = 11 : i64} {
  func.func @_gcn_kernel(%arg0: i32, %arg1: i32, %arg2: memref<8x8xbf16, #tpu.memory_space<vmem>>, %arg3: memref<8x128xbf16, #tpu.memory_space<vmem>>, %arg4: memref<128x128xf32, #tpu.memory_space<vmem>>, %arg5: memref<1x128xf32, #tpu.memory_space<vmem>>, %arg6: memref<8x1xf32, #tpu.memory_space<vmem>>, %arg7: memref<8x128xf32, #tpu.memory_space<vmem>>, %arg8: memref<8x128xf32, #tpu.memory_space<vmem>>) attributes {dimension_semantics = [#tpu.dimension_semantics<parallel>, #tpu.dimension_semantics<arbitrary>], iteration_bounds = array<i64: 1, 1>, scalar_prefetch = 0 : i64, scratch_operands = 1 : i64, tpu.core_type = #tpu.core_type<tc>, window_params = [{transform_indices = @transform_0, window_bounds = array<i64: 8, 8>}, {transform_indices = @transform_1, window_bounds = array<i64: 8, 128>}, {pipeline_mode = #tpu.pipeline_mode<synchronous>, transform_indices = @transform_2, window_bounds = array<i64: 128, 128>}, {pipeline_mode = #tpu.pipeline_mode<synchronous>, transform_indices = @transform_3, window_bounds = array<i64: 1, 128>}, {transform_indices = @transform_4, window_bounds = array<i64: 8, 1>}, {transform_indices = @transform_5, window_bounds = array<i64: 8, 128>}]} {
    %c0_i32 = arith.constant 0 : i32
    %0 = arith.cmpi eq, %arg1, %c0_i32 : i32
    %1 = arith.extui %0 : i1 to i32
    %c0_i32_0 = arith.constant 0 : i32
    %2 = arith.cmpi ne, %1, %c0_i32_0 : i32
    scf.if %2 {
      %cst_10 = arith.constant 0.000000e+00 : f32
      %12 = vector.broadcast %cst_10 : f32 to vector<8x128xf32>
      %c0_11 = arith.constant 0 : index
      %c0_12 = arith.constant 0 : index
      %13 = vector.load %arg8[%c0_11, %c0_12] : memref<8x128xf32, #tpu.memory_space<vmem>>, vector<8x128xf32>
      tpu.vector_store %arg8[%c0_11, %c0_12], %12 {strides = array<i32>} : memref<8x128xf32, #tpu.memory_space<vmem>>, vector<8x128xf32>,
    } else {
    }
    %c0 = arith.constant 0 : index
    %c0_1 = arith.constant 0 : index
    %3 = vector.load %arg8[%c0, %c0_1] : memref<8x128xf32, #tpu.memory_space<vmem>>, vector<8x128xf32>
    %c0_2 = arith.constant 0 : index
    %c0_3 = arith.constant 0 : index
    %4 = vector.load %arg2[%c0_2, %c0_3] : memref<8x8xbf16, #tpu.memory_space<vmem>>, vector<8x8xbf16>
    %c0_4 = arith.constant 0 : index
    %c0_5 = arith.constant 0 : index
    %5 = vector.load %arg3[%c0_4, %c0_5] : memref<8x128xbf16, #tpu.memory_space<vmem>>, vector<8x128xbf16>
    %cst = arith.constant dense<0.000000e+00> : vector<8x128xf32>
    %6 = tpu.matmul %4, %5, %cst {dimension_numbers = #tpu.dot_dimension_numbers<[1], [0], [0], [1], [0, 0, 1, 1], [], []>} : vector<8x8xbf16>, vector<8x128xbf16>, vector<8x128xf32> -> vector<8x128xf32>
    %7 = arith.addf %3, %6 : vector<8x128xf32>
    %c0_6 = arith.constant 0 : index
    %c0_7 = arith.constant 0 : index
    %8 = vector.load %arg8[%c0_6, %c0_7] : memref<8x128xf32, #tpu.memory_space<vmem>>, vector<8x128xf32>
    tpu.vector_store %arg8[%c0_6, %c0_7], %7 {strides = array<i32>} : memref<8x128xf32, #tpu.memory_space<vmem>>, vector<8x128xf32>,
    %c0_i32_8 = arith.constant 0 : i32
    %9 = arith.cmpi eq, %arg1, %c0_i32_8 : i32
    %10 = arith.extui %9 : i1 to i32
    %c0_i32_9 = arith.constant 0 : i32
    %11 = arith.cmpi ne, %10, %c0_i32_9 : i32
    scf.if %11 {
      %c0_10 = arith.constant 0 : index
      %c0_11 = arith.constant 0 : index
      %12 = vector.load %arg6[%c0_10, %c0_11] : memref<8x1xf32, #tpu.memory_space<vmem>>, vector<8x1xf32>
      %c0_12 = arith.constant 0 : index
      %c0_13 = arith.constant 0 : index
      %13 = vector.load %arg8[%c0_12, %c0_13] : memref<8x128xf32, #tpu.memory_space<vmem>>, vector<8x128xf32>
      %14 = vector.broadcast %12 : vector<8x1xf32> to vector<8x128xf32>
      %15 = arith.mulf %14, %13 : vector<8x128xf32>
      %c0_14 = arith.constant 0 : index
      %c0_15 = arith.constant 0 : index
      %16 = vector.load %arg4[%c0_14, %c0_15] : memref<128x128xf32, #tpu.memory_space<vmem>>, vector<128x128xf32>
      %cst_16 = arith.constant dense<0.000000e+00> : vector<8x128xf32>
      %17 = tpu.matmul %15, %16, %cst_16 {dimension_numbers = #tpu.dot_dimension_numbers<[1], [0], [0], [1], [0, 0, 1, 1], [], []>} : vector<8x128xf32>, vector<128x128xf32>, vector<8x128xf32> -> vector<8x128xf32>
      %c0_17 = arith.constant 0 : index
      %c0_18 = arith.constant 0 : index
      %18 = vector.load %arg5[%c0_17, %c0_18] : memref<1x128xf32, #tpu.memory_space<vmem>>, vector<1x128xf32>
      %19 = vector.broadcast %18 : vector<1x128xf32> to vector<8x128xf32>
      %20 = arith.addf %17, %19 : vector<8x128xf32>
      %c0_19 = arith.constant 0 : index
      %c0_20 = arith.constant 0 : index
      %21 = vector.load %arg7[%c0_19, %c0_20] : memref<8x128xf32, #tpu.memory_space<vmem>>, vector<8x128xf32>
      tpu.vector_store %arg7[%c0_19, %c0_20], %20 {strides = array<i32>} : memref<8x128xf32, #tpu.memory_space<vmem>>, vector<8x128xf32>,
    } else {
    }
    return
  }
  func.func @transform_0(%arg0: i32, %arg1: i32) -> (i32, i32) {
    %c0_i32 = arith.constant 0 : i32
    return %arg0, %arg1 : i32, i32
  }
  func.func @transform_1(%arg0: i32, %arg1: i32) -> (i32, i32) {
    %c0_i32 = arith.constant 0 : i32
    %c0_i32_0 = arith.constant 0 : i32
    return %arg1, %c0_i32 : i32, i32
  }
  func.func @transform_2(%arg0: i32, %arg1: i32) -> (i32, i32) {
    %c0_i32 = arith.constant 0 : i32
    %c0_i32_0 = arith.constant 0 : i32
    %c0_i32_1 = arith.constant 0 : i32
    return %c0_i32, %c0_i32_0 : i32, i32
  }
  func.func @transform_3(%arg0: i32, %arg1: i32) -> (i32, i32) {
    %c0_i32 = arith.constant 0 : i32
    %c0_i32_0 = arith.constant 0 : i32
    %c0_i32_1 = arith.constant 0 : i32
    return %c0_i32, %c0_i32_0 : i32, i32
  }
  func.func @transform_4(%arg0: i32, %arg1: i32) -> (i32, i32) {
    %c0_i32 = arith.constant 0 : i32
    %c0_i32_0 = arith.constant 0 : i32
    return %arg0, %c0_i32 : i32, i32
  }
  func.func @transform_5(%arg0: i32, %arg1: i32) -> (i32, i32) {
    %c0_i32 = arith.constant 0 : i32
    %c0_i32_0 = arith.constant 0 : i32
    return %arg0, %c0_i32 : i32, i32
  }
}

</mosaic_0001>

<llo_original>
// kernel: encoder_forward.1
$region0: #{encoder_forward.1}
  #allocation0 [shape = 'u32[]', space=smem, size = 0x4, offset = 0x4, fixed_abs, tag = 'smem constant byte address 0x4 - core index']
  #allocation1 [shape = 'u32[144,128]{1,0:T(1,128)}', space=vmem, size = 0x12000, scoped, tag = 'internal scratch']
  #allocation2 [shape = 'f32[8,128]{1,0:T(8,128)}', space=vmem, size = 0x1000, scoped, tag = 'scratch operand']
  %s0 = inlined_call_operand.vmem [shape: bf16[8,8], index: 0, kind: input, shape index: {}]
  %s1 = inlined_call_operand.vmem [shape: bf16[8,128], index: 1, kind: input, shape index: {}]
  %s2 = inlined_call_operand.vmem [shape: f32[128,128], index: 2, kind: input, shape index: {}]
  %s3 = inlined_call_operand.vmem [shape: f32[1,128], index: 3, kind: input, shape index: {}]
  %s4 = inlined_call_operand.vmem [shape: f32[8,1], index: 4, kind: input, shape index: {}]
  %s5 = inlined_call_operand.hbm [shape: f32[8,128], index: 5, kind: output, shape index: {}]
  %s6 = sld [smem:[#allocation0]]
  $region38: #{encoder_forward.1} parent=0
    _
  %s8 = ssub.s32 1, %s6
  %s9 = scalar_select 0, %s8, %s6
  $region1: #{encoder_forward.1} parent=0
    #allocation3 [shape = 'u8[4096]{0}', space=vmem, size = 0x1000, scoped, tag = 'output window, operand 0, single buffered']
    #allocation4 [shape = 's32[1]{0}', space=sflag, size = 0x4, scoped, tag = 'scoped memory for encoder_forward.1']
    %10 = vsyncpa [#allocation4], 0
    // Predicated region
    $region2: #{encoder_forward.1} parent=1 // pred_check
      _
    $region3: #{encoder_forward.1} parent=1 // pred_check_branch
      %12 = sbr.rel (0) target = $region5
    $region4: #{encoder_forward.1} parent=1 // pred_region
      _
    $region5: #{encoder_forward.1} parent=1 // pred_fallthru
      _
    // Predicated region
    $region6: #{encoder_forward.1} parent=1 // pred_check
      _
    $region7: #{encoder_forward.1} parent=1 // pred_check_branch
      %14 = sbr.rel (0) target = $region9
    $region8: #{encoder_forward.1} parent=1 // pred_region
      _
    $region9: #{encoder_forward.1} parent=1 // pred_fallthru
      _
    // Predicated region
    $region10: #{encoder_forward.1} parent=1 // pred_check
      _
    $region11: #{encoder_forward.1} parent=1 // pred_check_branch
      %16 = sbr.rel (0) target = $region13
    $region12: #{encoder_forward.1} parent=1 // pred_region
      _
    $region13: #{encoder_forward.1} parent=1 // pred_fallthru
      _
    // Predicated region
    $region14: #{encoder_forward.1} parent=1 // pred_check
      _
    $region15: #{encoder_forward.1} parent=1 // pred_check_branch
      %18 = sbr.rel (0) target = $region17
    $region16: #{encoder_forward.1} parent=1 // pred_region
      _
    $region17: #{encoder_forward.1} parent=1 // pred_fallthru
      _
    // Predicated region
    $region18: #{encoder_forward.1} parent=1 // pred_check
      _
    $region19: #{encoder_forward.1} parent=1 // pred_check_branch
      %20 = sbr.rel (0) target = $region21
    $region20: #{encoder_forward.1} parent=1 // pred_region
      _
    $region21: #{encoder_forward.1} parent=1 // pred_fallthru
      _
    %p22 = scmp.eq.s32.totalorder 0, 0
    // Predicated region
    $region22: #{encoder_forward.1} parent=1 // pred_check
      %p23 = pneg %p22
    $region23: #{encoder_forward.1} parent=1 // pred_check_branch
      %25 = sbr.rel (%p23) target = $region25
    $region24: #{encoder_forward.1} parent=1 // pred_region
      %26 = vst [vmem:[#allocation2] sm:$0xff] 0.0
    $region25: #{encoder_forward.1} parent=1 // pred_fallthru
      _
    %v27 = vld [vmem:[#allocation2] sm:$0xff]
    %v28 = vld [vmem:[%s0] sm:$0xf]
    %v29 = vld [vmem:[%s1] sm:$0xf]
    %vm30 = vcmask 64512
    %v32 = vsel %vm30, %v28, 0
    %vm34 = vcmask 1043456
    %v36 = vsel %vm34, %v29, 0
    %38 = vmatprep.subr.bf16.mxu0 0
    %39 = vmatpush1.bf16.msra.mxu0 0
    %40 = vmatprep.subr.bf16.mxu0 0
    %41 = vmatpush1.bf16.msra.mxu0 0
    %42 = vmatprep.subr.bf16.mxu0 0
    %43 = vmatpush1.bf16.msra.mxu0 0
    %44 = vmatprep.subr.bf16.mxu0 0
    %45 = vmatpush1.bf16.msra.mxu0 0
    %46 = vmatprep.subr.bf16.mxu0 0
    %47 = vmatpush1.bf16.msra.mxu0 0
    %48 = vmatprep.subr.bf16.mxu0 0
    %49 = vmatpush1.bf16.msra.mxu0 0
    %50 = vmatprep.subr.bf16.mxu0 0
    %51 = vmatpush1.bf16.msra.mxu0 0
    %52 = vmatprep.subr.bf16.mxu0 0
    %53 = vmatpush1.bf16.msra.mxu0 %v36
    %54 = vmatprep.subr.bf16.mxu0 0
    %55 = vmatpush2.bf16.msra.mxu0 0
    %56 = vmatprep.subr.bf16.mxu0 0
    %57 = vmatpush2.bf16.msra.mxu0 0
    %58 = vmatprep.subr.bf16.mxu0 0
    %59 = vmatpush2.bf16.msra.mxu0 0
    %60 = vmatprep.subr.bf16.mxu0 0
    %61 = vmatpush2.bf16.msra.mxu0 0
    %62 = vmatprep.subr.bf16.mxu0 0
    %63 = vmatpush2.bf16.msra.mxu0 0
    %64 = vmatprep.subr.bf16.mxu0 0
    %65 = vmatpush2.bf16.msra.mxu0 0
    %66 = vmatprep.subr.bf16.mxu0 0
    %67 = vmatpush2.bf16.msra.mxu0 0
    %68 = vmatprep.subr.bf16.mxu0 0
    %69 = vmatpush2.bf16.msra.mxu0 0
    %70 = vmatprep.mubr.bf16.mxu0 0
    %71 = vmatmul.mubr.bf16.gmra.mxu0 %v32
    %v72 = vpop.f32.mrf.mxu0
    %v73 = vadd.f32 0.0, %v72
    %v74 = vpop.f32.mrf.mxu0
    %v75 = vpop.f32.mrf.mxu0
    %v76 = vpop.f32.mrf.mxu0
    %77 = vdwg.mxu0
    %v78 = vadd.f32 %v27, %v73
    %79 = vst [vmem:[#allocation2] sm:$0xff] %v78
    // Predicated region
    $region26: #{encoder_forward.1} parent=1 // pred_check
      %p80 = pneg %p22
    $region27: #{encoder_forward.1} parent=1 // pred_check_branch
      %82 = sbr.rel (%p80) target = $region29
    $region28: #{encoder_forward.1} parent=1 // pred_region
      %v83 = vld [vmem:[%s4] sm:$0xff]
      %v84 = vld [vmem:[#allocation2] sm:$0xff]
      %86 = vset.pattern.permute.xlu0 0
      %87 = vperm.xlu0 %86, %v83
      %v88 = vpop.permute.xlu0 %87
      %v90 = vmul.f32 %v88, %v84
      %v91 = vld [vmem:[%s2] sm:$0xff]
      %v92 = vld [vmem:[%s2 + $0x8] sm:$0xff]
      %v93 = vld [vmem:[%s2 + $0x10] sm:$0xff]
      %v94 = vld [vmem:[%s2 + $0x18] sm:$0xff]
      %v95 = vld [vmem:[%s2 + $0x20] sm:$0xff]
      %v96 = vld [vmem:[%s2 + $0x28] sm:$0xff]
      %v97 = vld [vmem:[%s2 + $0x30] sm:$0xff]
      %v98 = vld [vmem:[%s2 + $0x38] sm:$0xff]
      %v99 = vld [vmem:[%s2 + $0x40] sm:$0xff]
      %v100 = vld [vmem:[%s2 + $0x48] sm:$0xff]
      %v101 = vld [vmem:[%s2 + $0x50] sm:$0xff]
      %v102 = vld [vmem:[%s2 + $0x58] sm:$0xff]
      %v103 = vld [vmem:[%s2 + $0x60] sm:$0xff]
      %v104 = vld [vmem:[%s2 + $0x68] sm:$0xff]
      %v105 = vld [vmem:[%s2 + $0x70] sm:$0xff]
      %v106 = vld [vmem:[%s2 + $0x78] sm:$0xff]
      %v107 = vld [vmem:[%s3] sm:$0x1]
      %v109 = vlaneseq
      %v110 = vshrl.u32 %v109, 7
      %v111 = vsub.s32 0, %v110
      %v112 = vrot.slane %v107, %v111
      %114 = vmatprep.subr.mxu0 0.0
      %115 = vmatpush1.msra.mxu0 %v106
      %116 = vmatprep.subr.mxu0 0.0
      %117 = vmatpush1.msra.mxu0 %v105
      %118 = vmatprep.subr.mxu0 0.0
      %119 = vmatpush1.msra.mxu0 %v104
      %120 = vmatprep.subr.mxu0 0.0
      %121 = vmatpush1.msra.mxu0 %v103
      %122 = vmatprep.subr.mxu0 0.0
      %123 = vmatpush1.msra.mxu0 %v102
      %124 = vmatprep.subr.mxu0 0.0
      %125 = vmatpush1.msra.mxu0 %v101
      %126 = vmatprep.subr.mxu0 0.0
      %127 = vmatpush1.msra.mxu0 %v100
      %128 = vmatprep.subr.mxu0 0.0
      %129 = vmatpush1.msra.mxu0 %v99
      %130 = vmatprep.subr.mxu0 0.0
      %131 = vmatpush1.msra.mxu0 %v98
      %132 = vmatprep.subr.mxu0 0.0
      %133 = vmatpush1.msra.mxu0 %v97
      %134 = vmatprep.subr.mxu0 0.0
      %135 = vmatpush1.msra.mxu0 %v96
      %136 = vmatprep.subr.mxu0 0.0
      %137 = vmatpush1.msra.mxu0 %v95
      %138 = vmatprep.subr.mxu0 0.0
      %139 = vmatpush1.msra.mxu0 %v94
      %140 = vmatprep.subr.mxu0 0.0
      %141 = vmatpush1.msra.mxu0 %v93
      %142 = vmatprep.subr.mxu0 0.0
      %143 = vmatpush1.msra.mxu0 %v92
      %144 = vmatprep.subr.mxu0 0.0
      %145 = vmatpush1.msra.mxu0 %v91
      %146 = vmatprep.subr.mxu0 0.0
      %147 = vmatpush2.msra.mxu0 0.0
      %148 = vmatprep.subr.mxu0 0.0
      %149 = vmatpush2.msra.mxu0 0.0
      %150 = vmatprep.subr.mxu0 0.0
      %151 = vmatpush2.msra.mxu0 0.0
      %152 = vmatprep.subr.mxu0 0.0
      %153 = vmatpush2.msra.mxu0 0.0
      %154 = vmatprep.subr.mxu0 0.0
      %155 = vmatpush2.msra.mxu0 0.0
      %156 = vmatprep.subr.mxu0 0.0
      %157 = vmatpush2.msra.mxu0 0.0
      %158 = vmatprep.subr.mxu0 0.0
      %159 = vmatpush2.msra.mxu0 0.0
      %160 = vmatprep.subr.mxu0 0.0
      %161 = vmatpush2.msra.mxu0 0.0
      %162 = vmatprep.subr.mxu0 0.0
      %163 = vmatpush2.msra.mxu0 0.0
      %164 = vmatprep.subr.mxu0 0.0
      %165 = vmatpush2.msra.mxu0 0.0
      %166 = vmatprep.subr.mxu0 0.0
      %167 = vmatpush2.msra.mxu0 0.0
      %168 = vmatprep.subr.mxu0 0.0
      %169 = vmatpush2.msra.mxu0 0.0
      %170 = vmatprep.subr.mxu0 0.0
      %171 = vmatpush2.msra.mxu0 0.0
      %172 = vmatprep.subr.mxu0 0.0
      %173 = vmatpush2.msra.mxu0 0.0
      %174 = vmatprep.subr.mxu0 0.0
      %175 = vmatpush2.msra.mxu0 0.0
      %176 = vmatprep.subr.mxu0 0.0
      %177 = vmatpush2.msra.mxu0 0.0
      %178 = vmatprep.mubr.f32.mxu0 0.0
      %179 = vmatmul.mubr.f32.gmra.mxu0 %v90
      %v180 = vpop.f32.mrf.mxu0
      %v181 = vadd.f32 %v112, %v180
      %v182 = vpop.f32.mrf.mxu0
      %183 = vdwg.mxu0
      %184 = vst [vmem:[#allocation3] sm:$0xff] %v181
    $region29: #{encoder_forward.1} parent=1 // pred_fallthru
      _
    // Predicated region
    $region30: #{encoder_forward.1} parent=1 // pred_check
      _
    $region31: #{encoder_forward.1} parent=1 // pred_check_branch
      %186 = sbr.rel (0) target = $region33
    $region32: #{encoder_forward.1} parent=1 // pred_region
      %s188 = ssub.s32 128, 128
      %189 = vsyncadd [#allocation4], %s188
      %s191 = sshll.u32 [#allocation3], 4
      %s192 = int_to_ptr.vmem [resolvable:$true] %s191
      %194 = dma.vmem_to_hbm [thread:$0]  %s192, 128, %s5, [#allocation4]
    $region33: #{encoder_forward.1} parent=1 // pred_fallthru
      _
    // Predicated region
    $region34: #{encoder_forward.1} parent=1 // pred_check
      _
    $region35: #{encoder_forward.1} parent=1 // pred_check_branch
      %196 = sbr.rel (0) target = $region37
    $region36: #{encoder_forward.1} parent=1 // pred_region
      %197 = dma.done [#allocation4], 128
    $region37: #{encoder_forward.1} parent=1 // pred_fallthru
      _
    %198 = vsyncpa [#allocation4], 1

</llo_original>
